<compile_context>
chip_gen: v5e
topology: v5e:2x2
jax: 0.10.0
libtpu: 0.0.40
codegen_flags: <defaults>
</compile_context>

<pallas_src>
import functools
import math

import jax
import jax.numpy as jnp
from jax.experimental import pallas as pl
from jax.experimental.pallas import tpu as pltpu


# -----------------------------------------------------------------------------
# Kernel
# -----------------------------------------------------------------------------
def duration_rnn_cell_kernel(active_ref, h_ref, x_ref, keep_ref,
                             wih_ref, whh_ref, bias_ref, out_ref):
    """One (TM, H) row block of the duration-gated RNN step.

    Row layout: row = band * B + batch (band-major).
      active_ref: (n_blocks,) int32 SMEM  scalar-prefetch; 1 if any row is active
      h_ref     : (TM, H)  f32            previous hidden (HBM-aliased with out)
      x_ref     : (TM, E)  bf16           band-replicated step input
      keep_ref  : (TM, 1)  f32            1.0 where the (band, batch) row is frozen
      wih_ref   : (E, H)   bf16           VMEM-resident across the grid
      whh_ref   : (H, H)   bf16           VMEM-resident across the grid
      bias_ref  : (1, H)   f32            b_ih + b_hh (fused)
      out_ref   : (TM, H)  f32
    """
    h_old = h_ref[...]
    block_active = active_ref[pl.program_id(0)] != 0

    @pl.when(block_active)
    def _compute():
        # TODO(synk): on v6e/v7x (256^2 MXU) the two matmuls could be fused into
        # one K=E+H pass against concat(W_ih; W_hh) to halve MXU fill/drain.
        x_proj = jnp.dot(x_ref[...], wih_ref[...],
                         preferred_element_type=jnp.float32)            # (TM, H)
        h_proj = jnp.dot(h_old.astype(whh_ref.dtype), whh_ref[...],
                         preferred_element_type=jnp.float32)            # (TM, H)
        h_new = jnp.tanh(x_proj + h_proj + bias_ref[...])
        keep = jnp.broadcast_to(keep_ref[...], h_old.shape) != 0.0
        out_ref[...] = jnp.where(keep, h_old, h_new)

    @pl.when(jnp.logical_not(block_active))
    def _frozen_passthrough():
        # Every row in this block is frozen: exact h_old passthrough, no MXU/EUP.
        out_ref[...] = h_old


# -----------------------------------------------------------------------------
# Wrapper
# -----------------------------------------------------------------------------
def _round_up(x, m):
    return ((x + m - 1) // m) * m


def duration_rnn_cell_forward(params, input_x, hidden, fix_duration, *,
                              n_hiddens, rescale_rate,
                              matmul_dtype=jnp.bfloat16, block_rows=512):
    """forward(input_x (B,1,E), hidden (N,B,H), fix_duration (B,)) -> (N,B,H)."""
    N = n_hiddens
    B, t, E = input_x.shape
    Nh, Bh, H = hidden.shape
    assert t == 1 and Nh == N and Bh == B
    NB = N * B

    # Row tile: multiple of 8 sublanes; big tiles amortize per-step overhead.
    TM = _round_up(min(block_rows, _round_up(NB, 8)), 8)
    NB_pad = _round_up(NB, TM)
    n_blocks = NB_pad // TM
    pad = NB_pad - NB

    x2d = input_x.reshape(B, E).astype(matmul_dtype)
    # Band-major replication of x: row = band * B + batch (matches hidden layout).
    x_rep = jnp.tile(x2d, (N, 1))                                   # (NB, E) bf16
    h_flat = hidden.astype(jnp.float32).reshape(NB, H)              # (NB, H) f32

    # Duration gate precomputed in the wrapper (no in-kernel iota / divide).
    thr = jnp.floor(fix_duration.astype(jnp.float32) / float(rescale_rate))  # (B,)
    keep_old = (jnp.arange(N, dtype=jnp.float32)[:, None] > thr[None, :])    # (N, B)
    keep_old = keep_old.astype(jnp.float32).reshape(NB, 1)

    if pad:
        x_rep = jnp.pad(x_rep, ((0, pad), (0, 0)))
        h_flat = jnp.pad(h_flat, ((0, pad), (0, 0)))
        keep_old = jnp.pad(keep_old, ((0, pad), (0, 0)), constant_values=1.0)

    # Per-block activity flag (scalar prefetch): 1 iff any row in the block is
    # NOT frozen. Fully frozen blocks skip matmul + tanh in-kernel.
    active = (keep_old.reshape(n_blocks, TM) < 0.5).any(axis=1).astype(jnp.int32)

    w_ih = params['weight_ih'][0].astype(matmul_dtype)              # (E, H)
    w_hh = params['weight_hh'][0].astype(matmul_dtype)              # (H, H)
    bias = (params['bias_ih'] + params['bias_hh']).astype(jnp.float32)  # (1, H)

    its = jnp.dtype(matmul_dtype).itemsize
    # Actual VMEM footprint: double-buffered blocks + resident weights, + headroom.
    block_bytes = TM * E * its + TM * H * 4 + TM * 4 + TM * H * 4
    resident_bytes = (E * H + H * H) * its + H * 4 + _round_up(n_blocks, 128) * 4
    vmem_bytes = int(min(48 * 1024 * 1024,
                         2 * (block_bytes + resident_bytes) + (8 << 20)))

    cost = pl.CostEstimate(
        flops=2 * NB_pad * (E + H) * H,
        transcendentals=NB_pad * H,
        bytes_accessed=(NB_pad * E * its + NB_pad * H * 4 + NB_pad * 4
                        + (E * H + H * H) * its + H * 4
                        + NB_pad * H * 4))

    grid_spec = pltpu.PrefetchScalarGridSpec(
        num_scalar_prefetch=1,
        grid=(n_blocks,),
        in_specs=[
            pl.BlockSpec((TM, H), lambda i, act: (i, 0)),    # h (aliased w/ out)
            pl.BlockSpec((TM, E), lambda i, act: (i, 0)),    # x (band-replicated)
            pl.BlockSpec((TM, 1), lambda i, act: (i, 0)),    # keep mask
            pl.BlockSpec((E, H), lambda i, act: (0, 0)),     # W_ih (resident)
            pl.BlockSpec((H, H), lambda i, act: (0, 0)),     # W_hh (resident)
            pl.BlockSpec((1, H), lambda i, act: (0, 0)),     # fused bias
        ],
        out_specs=pl.BlockSpec((TM, H), lambda i, act: (i, 0)),
    )

    out_flat = pl.pallas_call(
        duration_rnn_cell_kernel,
        out_shape=jax.ShapeDtypeStruct((NB_pad, H), jnp.float32),
        grid_spec=grid_spec,
        # args: (active[prefetch], h_flat, x_rep, keep_old, w_ih, w_hh, bias)
        # -> h_flat is flat-input index 1; alias it with output 0 (in-place state).
        input_output_aliases={1: 0},
        compiler_params=pltpu.CompilerParams(
            dimension_semantics=("parallel",),
            vmem_limit_bytes=vmem_bytes),
        cost_estimate=cost,
    )(active, h_flat, x_rep, keep_old, w_ih, w_hh, bias)

    return out_flat[:NB].reshape(N, B, H)


# -----------------------------------------------------------------------------
# Parameters (matches durationRNNCellv4.init_weights)
# -----------------------------------------------------------------------------
def init_params(key, input_size, hidden_size):
    k = math.sqrt(1.0 / hidden_size)
    k1, k2, k3, k4 = jax.random.split(key, 4)
    return dict(
        weight_ih=jax.random.uniform(k1, (1, input_size, hidden_size), jnp.float32, -k, k),
        weight_hh=jax.random.uniform(k2, (1, hidden_size, hidden_size), jnp.float32, -k, k),
        bias_ih=jax.random.uniform(k3, (1, hidden_size), jnp.float32, -k, k),
        bias_hh=jax.random.uniform(k4, (1, hidden_size), jnp.float32, -k, k),
    )


# -----------------------------------------------------------------------------
# Pure-JAX reference (literal translation of the PyTorch forward)
# -----------------------------------------------------------------------------
def reference_forward(params, input_x, hidden, fix_duration, *,
                      n_hiddens, rescale_rate, matmul_dtype=jnp.float32):
    N = n_hiddens
    B = input_x.shape[0]
    H = hidden.shape[-1]
    x = jnp.transpose(input_x, (1, 0, 2))                                      # (1, B, E)
    thr = jnp.floor(fix_duration.astype(jnp.float32) / float(rescale_rate))
    mask = (jnp.arange(N)[:, None] > thr[None, :])[:, :, None]                 # (N, B, 1)
    mask_f = mask.astype(jnp.float32)

    x_proj = jnp.einsum('tbe,teh->tbh',
                        x.astype(matmul_dtype),
                        params['weight_ih'].astype(matmul_dtype),
                        preferred_element_type=jnp.float32)
    x_proj = x_proj + params['bias_ih'][:, None, :]                            # (1, B, H)

    h_old = hidden
    h_masked = jnp.where(mask, 0.0, hidden).astype(matmul_dtype)
    w_hh = jnp.broadcast_to(params['weight_hh'],
                            (N,) + params['weight_hh'].shape[1:]).astype(matmul_dtype)
    h_proj = jnp.einsum('nbh,nhk->nbk', h_masked, w_hh,
                        preferred_element_type=jnp.float32)
    b_hh = jnp.broadcast_to(params['bias_hh'][:, None, :], (N, B, H))
    h_proj = h_proj + jnp.where(mask, 0.0, b_hh)

    h_new = jnp.tanh(x_proj + h_proj)
    return h_new * (1.0 - mask_f) + h_old * mask_f


if __name__ == "__main__":
    B = 2            # batch
    E = 64           # input_size
    H = 128          # hidden_size (>=128 keeps tiles lane-dense)
    N = 8            # n_hiddens (duration bands)
    MAX_DURATION = 16
    RESCALE = MAX_DURATION // N          # 2 (matches max_duration // n_hiddens)

    key = jax.random.PRNGKey(0)
    k_par, k_x, k_h = jax.random.split(key, 3)
    params = init_params(k_par, E, H)
    input_x = jax.random.normal(k_x, (B, 1, E), jnp.float32)
    hidden = jax.random.uniform(k_h, (N, B, H), jnp.float32, -0.5, 0.5)
    # durations 2.0 / 7.0 -> thresholds 1 / 3: mixes active + frozen bands, and
    # with block_rows=8 the second row block is fully frozen (skip path runs).
    fix_duration = jnp.array([2.0, 7.0], jnp.float32)

    fwd_multi = jax.jit(functools.partial(
        duration_rnn_cell_forward, n_hiddens=N, rescale_rate=RESCALE,
        block_rows=8))        # 2 row blocks -> exercises pipeline + frozen skip
    fwd_single = jax.jit(functools.partial(
        duration_rnn_cell_forward, n_hiddens=N, rescale_rate=RESCALE))

    out = jax.block_until_ready(fwd_multi(params, input_x, hidden, fix_duration))
    out_single = jax.block_until_ready(
        fwd_single(params, input_x, hidden, fix_duration))
    assert out.shape == (N, B, H)
    # Multi-block (with frozen-block skip) and single-block paths must agree.
    assert jnp.allclose(out, out_single, atol=1e-6, rtol=0.0), \
        float(jnp.max(jnp.abs(out - out_single)))

    ref_bf16 = reference_forward(params, input_x, hidden, fix_duration,
                                 n_hiddens=N, rescale_rate=RESCALE,
                                 matmul_dtype=jnp.bfloat16)
    ref_f32 = reference_forward(params, input_x, hidden, fix_duration,
                                n_hiddens=N, rescale_rate=RESCALE,
                                matmul_dtype=jnp.float32)

    # Structural correctness: same bf16 operand rounding -> near-exact agreement.
    assert jnp.allclose(out, ref_bf16, atol=1e-4, rtol=1e-3), \
        float(jnp.max(jnp.abs(out - ref_bf16)))
    # bf16 kernel stays close to the full-f32 reference semantics.
    assert jnp.allclose(out, ref_f32, atol=3e-2, rtol=3e-2), \
        float(jnp.max(jnp.abs(out - ref_f32)))
    # Frozen (band, batch) rows must pass the old hidden state through exactly.
    thr = jnp.floor(fix_duration / RESCALE)
    mask = (jnp.arange(N)[:, None] > thr[None, :])[:, :, None]
    assert bool(jnp.all(jnp.where(mask, out == hidden, True)))

    print("KERNEL_OK")
</pallas_src>

<mosaic_0001>
module attributes {stable_mosaic.version = 11 : i64} {
  func.func @duration_rnn_cell_kernel(%arg0: i32, %arg1: memref<2xi32, #tpu.memory_space<smem>>, %arg2: memref<8x128xf32, #tpu.memory_space<vmem>>, %arg3: memref<8x64xbf16, #tpu.memory_space<vmem>>, %arg4: memref<8x1xf32, #tpu.memory_space<vmem>>, %arg5: memref<64x128xbf16, #tpu.memory_space<vmem>>, %arg6: memref<128x128xbf16, #tpu.memory_space<vmem>>, %arg7: memref<1x128xf32, #tpu.memory_space<vmem>>, %arg8: memref<8x128xf32, #tpu.memory_space<vmem>>) attributes {dimension_semantics = [#tpu.dimension_semantics<parallel>], iteration_bounds = array<i64: 2>, scalar_prefetch = 1 : i64, scratch_operands = 0 : i64, tpu.core_type = #tpu.core_type<tc>, window_params = [{transform_indices = @transform_0, window_bounds = array<i64: 8, 128>}, {transform_indices = @transform_1, window_bounds = array<i64: 8, 64>}, {transform_indices = @transform_2, window_bounds = array<i64: 8, 1>}, {pipeline_mode = #tpu.pipeline_mode<synchronous>, transform_indices = @transform_3, window_bounds = array<i64: 64, 128>}, {pipeline_mode = #tpu.pipeline_mode<synchronous>, transform_indices = @transform_4, window_bounds = array<i64: 128, 128>}, {pipeline_mode = #tpu.pipeline_mode<synchronous>, transform_indices = @transform_5, window_bounds = array<i64: 1, 128>}, {transform_indices = @transform_6, window_bounds = array<i64: 8, 128>}]} {
    %c0 = arith.constant 0 : index
    %c0_0 = arith.constant 0 : index
    %0 = vector.load %arg2[%c0, %c0_0] : memref<8x128xf32, #tpu.memory_space<vmem>>, vector<8x128xf32>
    %1 = arith.index_cast %arg0 : i32 to index
    %2 = memref.load %arg1[%1] : memref<2xi32, #tpu.memory_space<smem>>
    %c0_i32 = arith.constant 0 : i32
    %3 = arith.cmpi ne, %2, %c0_i32 : i32
    %4 = arith.extui %3 : i1 to i32
    %c0_i32_1 = arith.constant 0 : i32
    %5 = arith.cmpi ne, %4, %c0_i32_1 : i32
    scf.if %5 {
      %c0_3 = arith.constant 0 : index
      %c0_4 = arith.constant 0 : index
      %9 = vector.load %arg3[%c0_3, %c0_4] : memref<8x64xbf16, #tpu.memory_space<vmem>>, vector<8x64xbf16>
      %c0_5 = arith.constant 0 : index
      %c0_6 = arith.constant 0 : index
      %10 = vector.load %arg5[%c0_5, %c0_6] : memref<64x128xbf16, #tpu.memory_space<vmem>>, vector<64x128xbf16>
      %cst = arith.constant dense<0.000000e+00> : vector<8x128xf32>
      %11 = tpu.matmul %9, %10, %cst {dimension_numbers = #tpu.dot_dimension_numbers<[1], [0], [0], [1], [0, 0, 1, 1], [], []>} : vector<8x64xbf16>, vector<64x128xbf16>, vector<8x128xf32> -> vector<8x128xf32>
      %12 = arith.truncf %0 : vector<8x128xf32> to vector<8x128xbf16>
      %c0_7 = arith.constant 0 : index
      %c0_8 = arith.constant 0 : index
      %13 = vector.load %arg6[%c0_7, %c0_8] : memref<128x128xbf16, #tpu.memory_space<vmem>>, vector<128x128xbf16>
      %cst_9 = arith.constant dense<0.000000e+00> : vector<8x128xf32>
      %14 = tpu.matmul %12, %13, %cst_9 {dimension_numbers = #tpu.dot_dimension_numbers<[1], [0], [0], [1], [0, 0, 1, 1], [], []>} : vector<8x128xbf16>, vector<128x128xbf16>, vector<8x128xf32> -> vector<8x128xf32>
      %15 = arith.addf %11, %14 : vector<8x128xf32>
      %c0_10 = arith.constant 0 : index
      %c0_11 = arith.constant 0 : index
      %16 = vector.load %arg7[%c0_10, %c0_11] : memref<1x128xf32, #tpu.memory_space<vmem>>, vector<1x128xf32>
      %17 = vector.broadcast %16 : vector<1x128xf32> to vector<8x128xf32>
      %18 = arith.addf %15, %17 : vector<8x128xf32>
      %19 = math.tanh %18 : vector<8x128xf32>
      %c0_12 = arith.constant 0 : index
      %c0_13 = arith.constant 0 : index
      %20 = vector.load %arg4[%c0_12, %c0_13] : memref<8x1xf32, #tpu.memory_space<vmem>>, vector<8x1xf32>
      %21 = vector.shape_cast %20 : vector<8x1xf32> to vector<8x1xf32>
      %22 = vector.broadcast %21 : vector<8x1xf32> to vector<8x128xf32>
      %cst_14 = arith.constant 0.000000e+00 : f32
      %23 = vector.broadcast %cst_14 : f32 to vector<8x128xf32>
      %24 = arith.cmpf one, %22, %23 : vector<8x128xf32>
      %25 = arith.select %24, %0, %19 : vector<8x128xi1>, vector<8x128xf32>
      %c0_15 = arith.constant 0 : index
      %c0_16 = arith.constant 0 : index
      %26 = vector.load %arg8[%c0_15, %c0_16] : memref<8x128xf32, #tpu.memory_space<vmem>>, vector<8x128xf32>
      tpu.vector_store %arg8[%c0_15, %c0_16], %25 {strides = array<i32>} : memref<8x128xf32, #tpu.memory_space<vmem>>, vector<8x128xf32>,
    } else {
    }
    %true = arith.constant true
    %6 = arith.xori %3, %true : i1
    %7 = arith.extui %6 : i1 to i32
    %c0_i32_2 = arith.constant 0 : i32
    %8 = arith.cmpi ne, %7, %c0_i32_2 : i32
    scf.if %8 {
      %c0_3 = arith.constant 0 : index
      %c0_4 = arith.constant 0 : index
      %9 = vector.load %arg8[%c0_3, %c0_4] : memref<8x128xf32, #tpu.memory_space<vmem>>, vector<8x128xf32>
      tpu.vector_store %arg8[%c0_3, %c0_4], %0 {strides = array<i32>} : memref<8x128xf32, #tpu.memory_space<vmem>>, vector<8x128xf32>,
    } else {
    }
    return
  }
  func.func @transform_0(%arg0: i32, %arg1: memref<2xi32, #tpu.memory_space<smem>>) -> (i32, i32) {
    %c0_i32 = arith.constant 0 : i32
    %c0_i32_0 = arith.constant 0 : i32
    return %arg0, %c0_i32 : i32, i32
  }
  func.func @transform_1(%arg0: i32, %arg1: memref<2xi32, #tpu.memory_space<smem>>) -> (i32, i32) {
    %c0_i32 = arith.constant 0 : i32
    %c0_i32_0 = arith.constant 0 : i32
    return %arg0, %c0_i32 : i32, i32
  }
  func.func @transform_2(%arg0: i32, %arg1: memref<2xi32, #tpu.memory_space<smem>>) -> (i32, i32) {
    %c0_i32 = arith.constant 0 : i32
    %c0_i32_0 = arith.constant 0 : i32
    return %arg0, %c0_i32 : i32, i32
  }
  func.func @transform_3(%arg0: i32, %arg1: memref<2xi32, #tpu.memory_space<smem>>) -> (i32, i32) {
    %c0_i32 = arith.constant 0 : i32
    %c0_i32_0 = arith.constant 0 : i32
    %c0_i32_1 = arith.constant 0 : i32
    return %c0_i32, %c0_i32_0 : i32, i32
  }
  func.func @transform_4(%arg0: i32, %arg1: memref<2xi32, #tpu.memory_space<smem>>) -> (i32, i32) {
    %c0_i32 = arith.constant 0 : i32
    %c0_i32_0 = arith.constant 0 : i32
    %c0_i32_1 = arith.constant 0 : i32
    return %c0_i32, %c0_i32_0 : i32, i32
  }
  func.func @transform_5(%arg0: i32, %arg1: memref<2xi32, #tpu.memory_space<smem>>) -> (i32, i32) {
    %c0_i32 = arith.constant 0 : i32
    %c0_i32_0 = arith.constant 0 : i32
    %c0_i32_1 = arith.constant 0 : i32
    return %c0_i32, %c0_i32_0 : i32, i32
  }
  func.func @transform_6(%arg0: i32, %arg1: memref<2xi32, #tpu.memory_space<smem>>) -> (i32, i32) {
    %c0_i32 = arith.constant 0 : i32
    %c0_i32_0 = arith.constant 0 : i32
    return %arg0, %c0_i32 : i32, i32
  }
}

</mosaic_0001>

<llo_original>
// kernel: duration_rnn_cell_forward.1
$region0: #{duration_rnn_cell_forward.1}
  #allocation0 [shape = 'u32[]', space=smem, size = 0x4, offset = 0x4, fixed_abs, tag = 'smem constant byte address 0x4 - core index']
  #allocation1 [shape = 'u32[72,128]{1,0:T(1,128)}', space=vmem, size = 0x9000, scoped, tag = 'internal scratch']
  #allocation2 [shape = 's32[1]{0}', space=sflag, size = 0x4, scoped, tag = 'scoped memory for duration_rnn_cell_forward.1']
  #allocation3 [shape = 'u8[512]{0}', space=smem, size = 0x200, scoped, tag = 'prefetched SMEM operand 0']
  %s0 = inlined_call_operand.vmem [shape: s32[2], index: 0, kind: input, shape index: {}]
  %s1 = inlined_call_operand.vmem [shape: f32[16,128], index: 1, kind: input, shape index: {}, may-alias: {1,7}]
  %s2 = inlined_call_operand.vmem [shape: bf16[16,64], index: 2, kind: input, shape index: {}]
  %s3 = inlined_call_operand.vmem [shape: f32[16,1], index: 3, kind: input, shape index: {}]
  %s4 = inlined_call_operand.vmem [shape: bf16[64,128], index: 4, kind: input, shape index: {}]
  %s5 = inlined_call_operand.vmem [shape: bf16[128,128], index: 5, kind: input, shape index: {}]
  %s6 = inlined_call_operand.vmem [shape: f32[1,128], index: 6, kind: input, shape index: {}]
  %s7 = inlined_call_operand.vmem [shape: f32[16,128], index: 7, kind: output, shape index: {}, may-alias: {1,7}]
  %s8 = sld [smem:[#allocation0]]
  $region65: #{duration_rnn_cell_forward.1} parent=0
    _
  %s10 = ssub.s32 1, %s8
  %s11 = scalar_select 0, %s10, %s8
  %s13 = sshll.u32 %s0, 4
  %s14 = int_to_ptr.vmem [resolvable:$true] %s13
  %16 = dma.vmem_to_smem %s14, 16, [#allocation3], [#allocation2]
  %18 = dma.done [#allocation2], 16
  %19 = sfence
  loop: start=0, step=1, limit=4
  $region2: #{duration_rnn_cell_forward.1} parent=0 // loop_pre_header
    _
  $region3: #{duration_rnn_cell_forward.1} parent=0 // loop_header
    %s21 = sphi 0, %s25
    %p22 = scmp.ge.s32.totalorder %s21, 4
    %s31 = sphi 0, %s33
    %s34 = sphi 0, %s31
    %s35 = sphi 0, %s34
    %s51 = sphi 0, %s35
    %s57 = sphi 0, %s59
    %s60 = sphi 0, %s57
    %s61 = sphi 0, %s60
    %s77 = sphi 0, %s61
    %s83 = sphi 0, %s85
    %s86 = sphi 0, %s83
    %s87 = sphi 0, %s86
    %s103 = sphi 0, %s87
    %s107 = sphi 0, %s107
    %s109 = sphi 0, %s107
    %s110 = sphi 0, %s109
    %s124 = sphi 0, %s110
    %s128 = sphi 0, %s128
    %s130 = sphi 0, %s128
    %s131 = sphi 0, %s130
    %s145 = sphi 0, %s131
    %s149 = sphi 0, %s149
    %s151 = sphi 0, %s149
    %s152 = sphi 0, %s151
    %s166 = sphi 0, %s152
    %s172 = sphi 0, %s174
    %s175 = sphi 0, %s172
    %s176 = sphi 0, %s175
    %s192 = sphi 0, %s176
  $region4: #{duration_rnn_cell_forward.1} parent=0 // loop_header_branch
    %24 = sbr.rel (%p22) target = $region8
  $region5: #{duration_rnn_cell_forward.1} parent=0 // loop_body
    %s26 = ssub.s32 %s21, 1
    %s27 = ssub.s32 %s21, 2
    %s28 = sadd.s32 %s21, 1
    %s29 = ssub.s32 %s21, %s28
    %p30 = scmp.eq.s32.totalorder %s29, 0
    %s32 = sadd.s32 %s31, 1
    %s33 = scalar_select %p30, %s31, %s32
    %p36 = pneg %p30
    %p37 = scmp.eq.s32.totalorder %s21, 1
    %p38 = por %p36, %p37
    %p39 = scmp.ne.s32.totalorder %s31, %s34
    %p40 = scmp.eq.s32.totalorder %s21, 0
    %p41 = por %p39, %p40
    %p42 = scmp.ne.s32.totalorder %s31, %s34
    %p43 = scmp.eq.s32.totalorder %s26, 1
    %p44 = por %p42, %p43
    %p45 = scmp.ne.s32.totalorder %s34, %s35
    %p46 = scmp.eq.s32.totalorder %s26, 0
    %p47 = por %p45, %p46
    %p48 = scmp.ne.s32.totalorder %s34, %s35
    %p49 = scmp.eq.s32.totalorder %s27, 1
    %p50 = por %p48, %p49
    %p52 = scmp.ne.s32.totalorder %s35, %s51
    %p53 = scmp.eq.s32.totalorder %s27, 0
    %p54 = por %p52, %p53
    %s55 = ssub.s32 %s21, %s28
    %p56 = scmp.eq.s32.totalorder %s55, 0
    %s58 = sadd.s32 %s57, 1
    %s59 = scalar_select %p56, %s57, %s58
    %p62 = pneg %p56
    %p63 = scmp.eq.s32.totalorder %s21, 1
    %p64 = por %p62, %p63
    %p65 = scmp.ne.s32.totalorder %s57, %s60
    %p66 = scmp.eq.s32.totalorder %s21, 0
    %p67 = por %p65, %p66
    %p68 = scmp.ne.s32.totalorder %s57, %s60
    %p69 = scmp.eq.s32.totalorder %s26, 1
    %p70 = por %p68, %p69
    %p71 = scmp.ne.s32.totalorder %s60, %s61
    %p72 = scmp.eq.s32.totalorder %s26, 0
    %p73 = por %p71, %p72
    %p74 = scmp.ne.s32.totalorder %s60, %s61
    %p75 = scmp.eq.s32.totalorder %s27, 1
    %p76 = por %p74, %p75
    %p78 = scmp.ne.s32.totalorder %s61, %s77
    %p79 = scmp.eq.s32.totalorder %s27, 0
    %p80 = por %p78, %p79
    %s81 = ssub.s32 %s21, %s28
    %p82 = scmp.eq.s32.totalorder %s81, 0
    %s84 = sadd.s32 %s83, 1
    %s85 = scalar_select %p82, %s83, %s84
    %p88 = pneg %p82
    %p89 = scmp.eq.s32.totalorder %s21, 1
    %p90 = por %p88, %p89
    %p91 = scmp.ne.s32.totalorder %s83, %s86
    %p92 = scmp.eq.s32.totalorder %s21, 0
    %p93 = por %p91, %p92
    %p94 = scmp.ne.s32.totalorder %s83, %s86
    %p95 = scmp.eq.s32.totalorder %s26, 1
    %p96 = por %p94, %p95
    %p97 = scmp.ne.s32.totalorder %s86, %s87
    %p98 = scmp.eq.s32.totalorder %s26, 0
    %p99 = por %p97, %p98
    %p100 = scmp.ne.s32.totalorder %s86, %s87
    %p101 = scmp.eq.s32.totalorder %s27, 1
    %p102 = por %p100, %p101
    %p104 = scmp.ne.s32.totalorder %s87, %s103
    %p105 = scmp.eq.s32.totalorder %s27, 0
    %p106 = por %p104, %p105
    %s108 = sadd.s32 %s107, 1
    %p111 = scmp.eq.s32.totalorder %s21, 1
    %p112 = scmp.ne.s32.totalorder %s107, %s109
    %p113 = scmp.eq.s32.totalorder %s21, 0
    %p114 = por %p112, %p113
    %p115 = scmp.ne.s32.totalorder %s107, %s109
    %p116 = scmp.eq.s32.totalorder %s26, 1
    %p117 = por %p115, %p116
    %p118 = scmp.ne.s32.totalorder %s109, %s110
    %p119 = scmp.eq.s32.totalorder %s26, 0
    %p120 = por %p118, %p119
    %p121 = scmp.ne.s32.totalorder %s109, %s110
    %p122 = scmp.eq.s32.totalorder %s27, 1
    %p123 = por %p121, %p122
    %p125 = scmp.ne.s32.totalorder %s110, %s124
    %p126 = scmp.eq.s32.totalorder %s27, 0
    %p127 = por %p125, %p126
    %s129 = sadd.s32 %s128, 1
    %p132 = scmp.eq.s32.totalorder %s21, 1
    %p133 = scmp.ne.s32.totalorder %s128, %s130
    %p134 = scmp.eq.s32.totalorder %s21, 0
    %p135 = por %p133, %p134
    %p136 = scmp.ne.s32.totalorder %s128, %s130
    %p137 = scmp.eq.s32.totalorder %s26, 1
    %p138 = por %p136, %p137
    %p139 = scmp.ne.s32.totalorder %s130, %s131
    %p140 = scmp.eq.s32.totalorder %s26, 0
    %p141 = por %p139, %p140
    %p142 = scmp.ne.s32.totalorder %s130, %s131
    %p143 = scmp.eq.s32.totalorder %s27, 1
    %p144 = por %p142, %p143
    %p146 = scmp.ne.s32.totalorder %s131, %s145
    %p147 = scmp.eq.s32.totalorder %s27, 0
    %p148 = por %p146, %p147
    %s150 = sadd.s32 %s149, 1
    %p153 = scmp.eq.s32.totalorder %s21, 1
    %p154 = scmp.ne.s32.totalorder %s149, %s151
    %p155 = scmp.eq.s32.totalorder %s21, 0
    %p156 = por %p154, %p155
    %p157 = scmp.ne.s32.totalorder %s149, %s151
    %p158 = scmp.eq.s32.totalorder %s26, 1
    %p159 = por %p157, %p158
    %p160 = scmp.ne.s32.totalorder %s151, %s152
    %p161 = scmp.eq.s32.totalorder %s26, 0
    %p162 = por %p160, %p161
    %p163 = scmp.ne.s32.totalorder %s151, %s152
    %p164 = scmp.eq.s32.totalorder %s27, 1
    %p165 = por %p163, %p164
    %p167 = scmp.ne.s32.totalorder %s152, %s166
    %p168 = scmp.eq.s32.totalorder %s27, 0
    %p169 = por %p167, %p168
    %s170 = ssub.s32 %s21, %s28
    %p171 = scmp.eq.s32.totalorder %s170, 0
    %s173 = sadd.s32 %s172, 1
    %s174 = scalar_select %p171, %s172, %s173
    %p177 = pneg %p171
    %p178 = scmp.eq.s32.totalorder %s21, 1
    %p179 = por %p177, %p178
    %p180 = scmp.ne.s32.totalorder %s172, %s175
    %p181 = scmp.eq.s32.totalorder %s21, 0
    %p182 = por %p180, %p181
    %p183 = scmp.ne.s32.totalorder %s172, %s175
    %p184 = scmp.eq.s32.totalorder %s26, 1
    %p185 = por %p183, %p184
    %p186 = scmp.ne.s32.totalorder %s175, %s176
    %p187 = scmp.eq.s32.totalorder %s26, 0
    %p188 = por %p186, %p187
    %p189 = scmp.ne.s32.totalorder %s175, %s176
    %p190 = scmp.eq.s32.totalorder %s27, 1
    %p191 = por %p189, %p190
    %p193 = scmp.ne.s32.totalorder %s176, %s192
    %p194 = scmp.eq.s32.totalorder %s27, 0
    %p195 = por %p193, %p194
    %p196 = scmp.le.s32.totalorder 1, %s21
    %p197 = scmp.lt.s32.totalorder %s21, 3
    %p198 = pnand %p196, %p197
    %p199 = pneg %p198
    // Predicated region
    $region9: #{duration_rnn_cell_forward.1} parent=5 // pred_check
      _
    $region10: #{duration_rnn_cell_forward.1} parent=5 // pred_check_branch
      %201 = sbr.rel (%p198) target = $region12
    $region11: #{duration_rnn_cell_forward.1} parent=5 // pred_region
      %s202 = ssub.s32 %s21, 1
      // Predicated region
      $region13: #{duration_rnn_cell_forward.1} parent=11 // pred_check
        %p203 = pneg %p120
      $region14: #{duration_rnn_cell_forward.1} parent=11 // pred_check_branch
        %205 = sbr.rel (%p203) target = $region16
      $region15: #{duration_rnn_cell_forward.1} parent=11 // pred_region
        _
      $region16: #{duration_rnn_cell_forward.1} parent=11 // pred_fallthru
        _
      // Predicated region
      $region17: #{duration_rnn_cell_forward.1} parent=11 // pred_check
        %p206 = pneg %p141
      $region18: #{duration_rnn_cell_forward.1} parent=11 // pred_check_branch
        %208 = sbr.rel (%p206) target = $region20
      $region19: #{duration_rnn_cell_forward.1} parent=11 // pred_region
        _
      $region20: #{duration_rnn_cell_forward.1} parent=11 // pred_fallthru
        _
      // Predicated region
      $region21: #{duration_rnn_cell_forward.1} parent=11 // pred_check
        %p209 = pneg %p162
      $region22: #{duration_rnn_cell_forward.1} parent=11 // pred_check_branch
        %211 = sbr.rel (%p209) target = $region24
      $region23: #{duration_rnn_cell_forward.1} parent=11 // pred_region
        _
      $region24: #{duration_rnn_cell_forward.1} parent=11 // pred_fallthru
        _
    $region12: #{duration_rnn_cell_forward.1} parent=5 // pred_fallthru
      _
    %p212 = scmp.lt.s32.totalorder %s21, 2
    // Predicated region
    $region25: #{duration_rnn_cell_forward.1} parent=5 // pred_check
      %p213 = pneg %p212
    $region26: #{duration_rnn_cell_forward.1} parent=5 // pred_check_branch
      %215 = sbr.rel (%p213) target = $region28
    $region27: #{duration_rnn_cell_forward.1} parent=5 // pred_region
      // Predicated region
      $region29: #{duration_rnn_cell_forward.1} parent=27 // pred_check
        %p216 = pneg %p41
      $region30: #{duration_rnn_cell_forward.1} parent=27 // pred_check_branch
        %218 = sbr.rel (%p216) target = $region32
      $region31: #{duration_rnn_cell_forward.1} parent=27 // pred_region
        %p219 = scmp.lt.s32.totalorder %s21, 1
        %s220 = scalar_select %p219, %s21, 1
        %s221 = smul.addr %s220, 8
        %s222 = scalar_lea.vmem %s1, %s221
      $region32: #{duration_rnn_cell_forward.1} parent=27 // pred_fallthru
        _
      // Predicated region
      $region33: #{duration_rnn_cell_forward.1} parent=27 // pred_check
        %p223 = pneg %p67
      $region34: #{duration_rnn_cell_forward.1} parent=27 // pred_check_branch
        %225 = sbr.rel (%p223) target = $region36
      $region35: #{duration_rnn_cell_forward.1} parent=27 // pred_region
        %p226 = scmp.lt.s32.totalorder %s21, 1
        %s227 = scalar_select %p226, %s21, 1
        %s228 = smul.addr %s227, 4
        %s229 = scalar_lea.vmem %s2, %s228
      $region36: #{duration_rnn_cell_forward.1} parent=27 // pred_fallthru
        _
      // Predicated region
      $region37: #{duration_rnn_cell_forward.1} parent=27 // pred_check
        %p230 = pneg %p93
      $region38: #{duration_rnn_cell_forward.1} parent=27 // pred_check_branch
        %232 = sbr.rel (%p230) target = $region40
      $region39: #{duration_rnn_cell_forward.1} parent=27 // pred_region
        %p233 = scmp.lt.s32.totalorder %s21, 1
        %s234 = scalar_select %p233, %s21, 1
        %s235 = smul.addr %s234, 8
        %s236 = scalar_lea.vmem %s3, %s235
      $region40: #{duration_rnn_cell_forward.1} parent=27 // pred_fallthru
        _
    $region28: #{duration_rnn_cell_forward.1} parent=5 // pred_fallthru
      _
    %p237 = scmp.le.s32.totalorder 1, %s21
    %p238 = scmp.lt.s32.totalorder %s21, 3
    %p239 = pnand %p237, %p238
    %p240 = pneg %p239
    // Predicated region
    $region41: #{duration_rnn_cell_forward.1} parent=5 // pred_check
      _
    $region42: #{duration_rnn_cell_forward.1} parent=5 // pred_check_branch
      %242 = sbr.rel (%p239) target = $region44
    $region43: #{duration_rnn_cell_forward.1} parent=5 // pred_region
      %s243 = ssub.s32 %s21, 1
      %p244 = scmp.lt.s32.totalorder %s26, 1
      %s245 = scalar_select %p244, %s26, 1
      %s246 = smul.addr %s245, 8
      %s247 = scalar_lea.vmem %s1, %s246
      %p248 = pneg %p47
      %p249 = pneg %p44
      %p250 = scmp.lt.s32.totalorder %s26, 1
      %s251 = scalar_select %p250, %s26, 1
      %s252 = smul.addr %s251, 4
      %s253 = scalar_lea.vmem %s2, %s252
      %p254 = pneg %p73
      %p255 = pneg %p70
      %p256 = scmp.lt.s32.totalorder %s26, 1
      %s257 = scalar_select %p256, %s26, 1
      %s258 = smul.addr %s257, 8
      %s259 = scalar_lea.vmem %s3, %s258
      %p260 = pneg %p99
      %p261 = pneg %p96
      %p262 = pneg %p120
      %p263 = pneg %p117
      %p264 = pneg %p141
      %p265 = pneg %p138
      %p266 = pneg %p162
      %p267 = pneg %p159
      %p268 = pneg %p188
      %p269 = pneg %p185
      %p270 = scmp.lt.s32.totalorder %s26, 1
      %s271 = scalar_select %p270, %s26, 1
      %s272 = smul.addr %s271, 8
      %s273 = scalar_lea.vmem %s7, %s272
      %p274 = scmp.lt.s32.totalorder %s26, 1
      %s275 = scalar_select %p274, %s26, 1
      %s276 = smul.addr %s275, 8
      %s277 = scalar_lea.vmem %s1, %s276
      %p278 = scmp.lt.s32.totalorder %s26, 1
      %s279 = scalar_select %p278, %s26, 1
      %s280 = smul.addr %s279, 4
      %s281 = scalar_lea.vmem %s2, %s280
      %p282 = scmp.lt.s32.totalorder %s26, 1
      %s283 = scalar_select %p282, %s26, 1
      %s284 = smul.addr %s283, 8
      %s285 = scalar_lea.vmem %s3, %s284
      %p286 = scmp.lt.s32.totalorder %s26, 1
      %s287 = scalar_select %p286, %s26, 1
      %s288 = smul.addr %s287, 8
      %s289 = scalar_lea.vmem %s7, %s288
      %v291 = vld [vmem:[%s277] sm:$0xff]
      %s292 = sld [smem:[#allocation3 + %s26]]
      %p293 = scmp.ne.s32.totalorder %s292, 0
      // Predicated region
      $region45: #{duration_rnn_cell_forward.1} parent=43 // pred_check
        %p294 = pneg %p293
      $region46: #{duration_rnn_cell_forward.1} parent=43 // pred_check_branch
        %296 = sbr.rel (%p294) target = $region48
      $region47: #{duration_rnn_cell_forward.1} parent=43 // pred_region
        %v297 = vld [vmem:[%s281] sm:$0xf]
        %v298 = vld [vmem:[%s4] sm:$0xf]
        %v299 = vld [vmem:[%s4 + $0x4] sm:$0xf]
        %v300 = vld [vmem:[%s4 + $0x8] sm:$0xf]
        %v301 = vld [vmem:[%s4 + $0xc] sm:$0xf]
        %v302 = vld [vmem:[%s4 + $0x10] sm:$0xf]
        %v303 = vld [vmem:[%s4 + $0x14] sm:$0xf]
        %v304 = vld [vmem:[%s4 + $0x18] sm:$0xf]
        %v305 = vld [vmem:[%s4 + $0x1c] sm:$0xf]
        %v306 = vpack.c.bf16 %v291, %v291
        %v307 = vld [vmem:[%s5] sm:$0xf]
        %v308 = vld [vmem:[%s5 + $0x4] sm:$0xf]
        %v309 = vld [vmem:[%s5 + $0x8] sm:$0xf]
        %v310 = vld [vmem:[%s5 + $0xc] sm:$0xf]
        %v311 = vld [vmem:[%s5 + $0x10] sm:$0xf]
        %v312 = vld [vmem:[%s5 + $0x14] sm:$0xf]
        %v313 = vld [vmem:[%s5 + $0x18] sm:$0xf]
        %v314 = vld [vmem:[%s5 + $0x1c] sm:$0xf]
        %v315 = vld [vmem:[%s5 + $0x20] sm:$0xf]
        %v316 = vld [vmem:[%s5 + $0x24] sm:$0xf]
        %v317 = vld [vmem:[%s5 + $0x28] sm:$0xf]
        %v318 = vld [vmem:[%s5 + $0x2c] sm:$0xf]
        %v319 = vld [vmem:[%s5 + $0x30] sm:$0xf]
        %v320 = vld [vmem:[%s5 + $0x34] sm:$0xf]
        %v321 = vld [vmem:[%s5 + $0x38] sm:$0xf]
        %v322 = vld [vmem:[%s5 + $0x3c] sm:$0xf]
        %v339 = vunpack.c.l.b16 %v307
        %v340 = vunpack.c.l.b16 %v308
        %v341 = vunpack.c.l.b16 %v309
        %v342 = vunpack.c.l.b16 %v310
        %v343 = vunpack.c.l.b16 %v311
        %v344 = vunpack.c.l.b16 %v312
        %v345 = vunpack.c.l.b16 %v313
        %v346 = vunpack.c.l.b16 %v314
        %v347 = vunpack.c.l.b16 %v315
        %v348 = vunpack.c.l.b16 %v316
        %v349 = vunpack.c.l.b16 %v317
        %v350 = vunpack.c.l.b16 %v318
        %v351 = vunpack.c.l.b16 %v319
        %v352 = vunpack.c.l.b16 %v320
        %v353 = vunpack.c.l.b16 %v321
        %v354 = vunpack.c.l.b16 %v322
        %v355 = vpack.c.b16 %v340, %v339
        %v356 = vpack.c.b16 %v342, %v341
        %v357 = vpack.c.b16 %v344, %v343
        %v358 = vpack.c.b16 %v346, %v345
        %v359 = vpack.c.b16 %v348, %v347
        %v360 = vpack.c.b16 %v350, %v349
        %v361 = vpack.c.b16 %v352, %v351
        %v362 = vpack.c.b16 %v354, %v353
        %371 = vmatpush.bf16.msra.mxu0 %v362
        %372 = vmatpush.bf16.msra.mxu0 %v361
        %373 = vmatpush.bf16.msra.mxu0 %v360
        %374 = vmatpush.bf16.msra.mxu0 %v359
        %375 = vmatpush.bf16.msra.mxu0 %v358
        %376 = vmatpush.bf16.msra.mxu0 %v357
        %377 = vmatpush.bf16.msra.mxu0 %v356
        %378 = vmatpush.bf16.msra.mxu0 %v355
        %379 = vmatmul.bf16.gmra.mxu0 %v306
        %v380 = vpop.f32.mrf.mxu0
        %v381 = vadd.f32 0.0, %v380
        %v382 = vpop.f32.mrf.mxu0
        %383 = vdwg.mxu0
        %v392 = vunpack.c.l.b16 %v298
        %v393 = vunpack.c.l.b16 %v299
        %v394 = vunpack.c.l.b16 %v300
        %v395 = vunpack.c.l.b16 %v301
        %v396 = vunpack.c.l.b16 %v302
        %v397 = vunpack.c.l.b16 %v303
        %v398 = vunpack.c.l.b16 %v304
        %v399 = vunpack.c.l.b16 %v305
        %v400 = vpack.c.b16 %v393, %v392
        %v401 = vpack.c.b16 %v395, %v394
        %v402 = vpack.c.b16 %v397, %v396
        %v403 = vpack.c.b16 %v399, %v398
        %vm408 = vcmask 523264
        %v410 = vsel %vm408, %v297, 0
        %412 = vmatpush.bf16.msra.mxu0 0
        %413 = vmatpush.bf16.msra.mxu0 0
        %414 = vmatpush.bf16.msra.mxu0 0
        %415 = vmatpush.bf16.msra.mxu0 0
        %416 = vmatpush.bf16.msra.mxu0 %v403
        %417 = vmatpush.bf16.msra.mxu0 %v402
        %418 = vmatpush.bf16.msra.mxu0 %v401
        %419 = vmatpush.bf16.msra.mxu0 %v400
        %420 = vmatmul.bf16.gmra.mxu0 %v410
        %v421 = vpop.f32.mrf.mxu0
        %v422 = vadd.f32 %v381, %v421
        %v423 = vpop.f32.mrf.mxu0
        %424 = vdwg.mxu0
        %v425 = vld [vmem:[%s6] sm:$0x1]
        %v427 = vperm.slane %v425, 0
        %v429 = vadd.f32 %v422, %v427
        %v430 = vtanh.pop %v429
        %v431 = vld [vmem:[%s285] sm:$0xff]
        %433 = vset.pattern.permute.xlu0 0
        %434 = vperm.xlu0 %433, %v431
        %v435 = vpop.permute.xlu0 %434
        %vm437 = vcmp.ne.f32.partialorder %v435, 0.0
        %v438 = vsel %vm437, %v291, %v430
        %439 = vst [vmem:[%s289] sm:$0xff] %v438
      $region48: #{duration_rnn_cell_forward.1} parent=43 // pred_fallthru
        _
      %p440 = scmp.eq.s32.totalorder %s292, 0
      // Predicated region
      $region49: #{duration_rnn_cell_forward.1} parent=43 // pred_check
        %p441 = pneg %p440
      $region50: #{duration_rnn_cell_forward.1} parent=43 // pred_check_branch
        %443 = sbr.rel (%p441) target = $region52
      $region51: #{duration_rnn_cell_forward.1} parent=43 // pred_region
        %444 = vst [vmem:[%s289] sm:$0xff] %v291
      $region52: #{duration_rnn_cell_forward.1} parent=43 // pred_fallthru
        _
      %p445 = scmp.lt.s32.totalorder %s26, 1
      %s446 = scalar_select %p445, %s26, 1
      %s447 = smul.addr %s446, 8
      %s448 = scalar_lea.vmem %s7, %s447
      // Predicated region
      $region53: #{duration_rnn_cell_forward.1} parent=43 // pred_check
        %p449 = pneg %p185
      $region54: #{duration_rnn_cell_forward.1} parent=43 // pred_check_branch
        %451 = sbr.rel (%p449) target = $region56
      $region55: #{duration_rnn_cell_forward.1} parent=43 // pred_region
        _
      $region56: #{duration_rnn_cell_forward.1} parent=43 // pred_fallthru
        _
    $region44: #{duration_rnn_cell_forward.1} parent=5 // pred_fallthru
      _
    %p452 = scmp.le.s32.totalorder 2, %s21
    // Predicated region
    $region57: #{duration_rnn_cell_forward.1} parent=5 // pred_check
      %p453 = pneg %p452
    $region58: #{duration_rnn_cell_forward.1} parent=5 // pred_check_branch
      %455 = sbr.rel (%p453) target = $region60
    $region59: #{duration_rnn_cell_forward.1} parent=5 // pred_region
      %s456 = ssub.s32 %s21, 2
      // Predicated region
      $region61: #{duration_rnn_cell_forward.1} parent=59 // pred_check
        %p457 = pneg %p191
      $region62: #{duration_rnn_cell_forward.1} parent=59 // pred_check_branch
        %459 = sbr.rel (%p457) target = $region64
      $region63: #{duration_rnn_cell_forward.1} parent=59 // pred_region
        %p460 = scmp.lt.s32.totalorder %s27, 1
        %s461 = scalar_select %p460, %s27, 1
        %s462 = smul.addr %s461, 8
        %s463 = scalar_lea.vmem %s7, %s462
      $region64: #{duration_rnn_cell_forward.1} parent=59 // pred_fallthru
        _
    $region60: #{duration_rnn_cell_forward.1} parent=5 // pred_fallthru
      _
  $region6: #{duration_rnn_cell_forward.1} parent=0 // loop_footer
    %s25 = sadd.s32 1, %s21
  $region7: #{duration_rnn_cell_forward.1} parent=0 // loop_footer_branch
    %20 = sbr.rel target = $region3
  $region8: #{duration_rnn_cell_forward.1} parent=0 // loop_exit
    _

</llo_original>
